<compile_context>
chip_gen: v6e
topology: v6e:2x2x1
jax: 0.10.0
libtpu: 0.0.40
codegen_flags: <defaults>
</compile_context>

<pallas_src>
import jax
import jax.numpy as jnp
from jax import lax
from jax.experimental import pallas as pl
from jax.experimental.pallas import tpu as pltpu

# True layer sizes from the module definition.
IN_FEATURES = 28 * 28 * 1          # 784
HIDDEN = (95, 90, 87, 82)          # hidden widths (each followed by LN + act)
OUT_FEATURES = 10
LN_EPS = 1e-5                      # PyTorch nn.LayerNorm default

H_PAD = 128                        # all hidden widths (and the output) pad to 128

# Row layout of the packed (16, H_PAD) f32 vector slab:
#   rows 3*i + 0/1/2 = bias / gamma / beta of hidden layer i (i = 0..3)
#   row  12          = output-layer bias
#   rows 13..15      = zero padding (sublane alignment)
_B5_ROW = 12


def _mlp_kernel(x_ref, w1_ref, wr_ref, vecs_ref, o_ref):
    """One (TB, 784) batch tile -> (TB, 10) output tile, fully in VMEM.

    x_ref  : (TB, 784)    f32 (or bf16)  raw flattened input tile
    w1_ref : (784, 128)   bf16           (zero-padded cols 95..127)
    wr_ref : (4, 128, 128) bf16          (W2, W3, W4, W5; zero-padded)
    vecs_ref: (16, 128)   f32            (biases / gammas / betas; zero lanes)
    o_ref  : (TB, 10)     f32            logits
    """
    vecs = vecs_ref[...]                                  # (16, 128) f32

    def linear(h_bf16, w_bf16):
        # MXU matmul, f32 accumulation.
        return jnp.dot(h_bf16, w_bf16, preferred_element_type=jnp.float32)

    def ln_act(z, i):
        # z: (TB, 128) f32. Padded lanes are exactly zero (padded W cols and
        # padded bias lanes are zero), so single-pass sums over all 128 lanes
        # equal the sums over the true `HIDDEN[i]` features.
        b = vecs[3 * i + 0:3 * i + 1]                     # (1, 128)
        g = vecs[3 * i + 1:3 * i + 2]
        be = vecs[3 * i + 2:3 * i + 3]
        z = z + b
        inv_d = 1.0 / float(HIDDEN[i])                    # true feature count
        s1 = jnp.sum(z, axis=-1, keepdims=True)
        s2 = jnp.sum(z * z, axis=-1, keepdims=True)
        mu = s1 * inv_d
        var = jnp.maximum(s2 * inv_d - mu * mu, 0.0)      # clamp for stability
        xhat = (z - mu) * lax.rsqrt(var + LN_EPS)         # rsqrt -> EUP slot
        # gamma/beta are zero in padded lanes -> output padded lanes are 0.
        out = xhat * g + be
        return jnp.maximum(out, 0.0)                      # ReLU

    # In-kernel cast to bf16 (no wrapper pre-pass); K=784 handled by Mosaic.
    x_bf = x_ref[...].astype(jnp.bfloat16)
    h = ln_act(linear(x_bf, w1_ref[...]), 0).astype(jnp.bfloat16)
    for i in range(1, 4):
        h = ln_act(linear(h, wr_ref[i - 1]), i).astype(jnp.bfloat16)
    # Output layer: W5 = wr_ref[3], bias = vecs row 12.
    logits = linear(h, wr_ref[3]) + vecs[_B5_ROW:_B5_ROW + 1]
    o_ref[...] = logits[:, :OUT_FEATURES]                 # lane-narrow store


def init_params(key):
    """Deterministic init (uniform +-1/sqrt(fan_in), like nn.Linear)."""
    dims = (IN_FEATURES,) + HIDDEN + (OUT_FEATURES,)
    raw = []
    for i in range(len(dims) - 1):
        fan_in, fan_out = dims[i], dims[i + 1]
        key, kw, kb = jax.random.split(key, 3)
        bound = 1.0 / (fan_in ** 0.5)
        w = jax.random.uniform(kw, (fan_in, fan_out), jnp.float32, -bound, bound)
        b = jax.random.uniform(kb, (fan_out,), jnp.float32, -bound, bound)
        raw.append((w, b))
    gammas = [jnp.ones((h,), jnp.float32) for h in HIDDEN]
    betas = [jnp.zeros((h,), jnp.float32) for h in HIDDEN]
    return raw, gammas, betas


def pack_params(raw, gammas, betas):
    """Pack into lane-dense bf16 matmul operands + one f32 vector slab."""
    def pad_cols(w):
        return jnp.pad(w, ((0, 0), (0, H_PAD - w.shape[1])))

    def pad2(w):
        return jnp.pad(w, ((0, H_PAD - w.shape[0]), (0, H_PAD - w.shape[1])))

    def pad1(v):
        return jnp.pad(v, (0, H_PAD - v.shape[0]))

    (w1, b1), (w2, b2), (w3, b3), (w4, b4), (w5, b5) = raw
    w1_p = pad_cols(w1).astype(jnp.bfloat16)              # (784, 128)
    w_rest = jnp.stack(
        [pad2(w) for w in (w2, w3, w4, w5)]).astype(jnp.bfloat16)  # (4,128,128)

    rows = []
    biases = (b1, b2, b3, b4)
    for i in range(4):
        rows += [pad1(biases[i]), pad1(gammas[i]), pad1(betas[i])]
    rows.append(pad1(b5))
    rows += [jnp.zeros((H_PAD,), jnp.float32)] * 3        # pad to 16 rows
    vecs = jnp.stack(rows).astype(jnp.float32)            # (16, 128)
    return w1_p, w_rest, vecs


def _choose_tb(n):
    # Small batches: one tile whose row extent equals the full batch (always a
    # legal block, no masking). Larger batches: >= 2 tiles so ("parallel",)
    # shards across v7x's two TensorCores; cap at 2048 rows (double-buffered
    # f32 x stream ~12.8 MB, well inside the 40 MiB VMEM limit on every gen).
    if n <= 256:
        return n
    half = -(-n // 2)                                      # ceil(n/2)
    half = ((half + 7) // 8) * 8                           # sublane-align
    return min(2048, half)


@jax.jit
def bad_vgg_dec_active_forward(x_nchw, w1_p, w_rest, vecs):
    n = x_nchw.shape[0]
    x = x_nchw.reshape(n, IN_FEATURES)    # nn.Flatten on NCHW (no copy/cast)

    tb = _choose_tb(n)
    grid = (pl.cdiv(n, tb),)              # ragged tail handled by Pallas masking

    flops = 2 * n * (IN_FEATURES * H_PAD + 4 * H_PAD * H_PAD)
    bytes_accessed = (n * IN_FEATURES * x.dtype.itemsize
                      + n * OUT_FEATURES * 4
                      + IN_FEATURES * H_PAD * 2 + 4 * H_PAD * H_PAD * 2
                      + 16 * H_PAD * 4)

    out = pl.pallas_call(
        _mlp_kernel,
        out_shape=jax.ShapeDtypeStruct((n, OUT_FEATURES), jnp.float32),
        grid_spec=pltpu.PrefetchScalarGridSpec(
            num_scalar_prefetch=0,
            grid=grid,
            in_specs=[
                pl.BlockSpec((tb, IN_FEATURES), lambda i: (i, 0)),       # x stream
                pl.BlockSpec((IN_FEATURES, H_PAD), lambda i: (0, 0)),    # W1
                pl.BlockSpec((4, H_PAD, H_PAD), lambda i: (0, 0, 0)),    # W2..W5
                pl.BlockSpec((16, H_PAD), lambda i: (0, 0)),             # vec slab
            ],
            out_specs=pl.BlockSpec((tb, OUT_FEATURES), lambda i: (i, 0)),
        ),
        compiler_params=pltpu.CompilerParams(
            dimension_semantics=("parallel",),
            vmem_limit_bytes=40 * 1024 * 1024,
        ),
        cost_estimate=pl.CostEstimate(
            flops=flops, transcendentals=4 * n, bytes_accessed=bytes_accessed),
    )(x, w1_p, w_rest, vecs)
    return out                                             # (n, 10) f32


def _reference_forward(x_nchw, raw, gammas, betas):
    """Pure-JAX reference matching the kernel's numerics (bf16 matmuls, f32 LN)."""
    h = x_nchw.reshape(x_nchw.shape[0], -1).astype(jnp.float32)
    for i in range(4):
        w, b = raw[i]
        z = jnp.dot(h.astype(jnp.bfloat16), w.astype(jnp.bfloat16),
                    preferred_element_type=jnp.float32) + b
        mu = jnp.mean(z, axis=-1, keepdims=True)
        var = jnp.mean(jnp.square(z - mu), axis=-1, keepdims=True)
        z = (z - mu) * lax.rsqrt(var + LN_EPS) * gammas[i] + betas[i]
        h = jnp.maximum(z, 0.0)
    w, b = raw[4]
    return jnp.dot(h.astype(jnp.bfloat16), w.astype(jnp.bfloat16),
                   preferred_element_type=jnp.float32) + b


if __name__ == "__main__":
    key = jax.random.PRNGKey(0)
    key, kparams, kx = jax.random.split(key, 3)

    raw, gammas, betas = init_params(kparams)
    w1_p, w_rest, vecs = pack_params(raw, gammas, betas)

    batch = 8
    x = jax.random.normal(kx, (batch, 1, 28, 28), jnp.float32)  # NCHW input

    out = bad_vgg_dec_active_forward(x, w1_p, w_rest, vecs)
    out = jax.block_until_ready(out)

    ref = _reference_forward(x, raw, gammas, betas)
    assert out.shape == (batch, OUT_FEATURES)
    assert jnp.allclose(out, ref, atol=2e-2, rtol=2e-2)

    print("KERNEL_OK")
</pallas_src>

<mosaic_0001>
module attributes {stable_mosaic.version = 11 : i64} {
  func.func @_mlp_kernel(%arg0: i32, %arg1: memref<8x784xf32, #tpu.memory_space<vmem>>, %arg2: memref<784x128xbf16, #tpu.memory_space<vmem>>, %arg3: memref<4x128x128xbf16, #tpu.memory_space<vmem>>, %arg4: memref<16x128xf32, #tpu.memory_space<vmem>>, %arg5: memref<8x10xf32, #tpu.memory_space<vmem>>) attributes {dimension_semantics = [#tpu.dimension_semantics<parallel>], iteration_bounds = array<i64: 1>, scalar_prefetch = 0 : i64, scratch_operands = 0 : i64, tpu.core_type = #tpu.core_type<tc>, window_params = [{transform_indices = @transform_0, window_bounds = array<i64: 8, 784>}, {pipeline_mode = #tpu.pipeline_mode<synchronous>, transform_indices = @transform_1, window_bounds = array<i64: 784, 128>}, {pipeline_mode = #tpu.pipeline_mode<synchronous>, transform_indices = @transform_2, window_bounds = array<i64: 4, 128, 128>}, {pipeline_mode = #tpu.pipeline_mode<synchronous>, transform_indices = @transform_3, window_bounds = array<i64: 16, 128>}, {transform_indices = @transform_4, window_bounds = array<i64: 8, 10>}]} {
    %c0 = arith.constant 0 : index
    %c0_0 = arith.constant 0 : index
    %0 = vector.load %arg4[%c0, %c0_0] : memref<16x128xf32, #tpu.memory_space<vmem>>, vector<16x128xf32>
    %c0_1 = arith.constant 0 : index
    %c0_2 = arith.constant 0 : index
    %1 = vector.load %arg1[%c0_1, %c0_2] : memref<8x784xf32, #tpu.memory_space<vmem>>, vector<8x784xf32>
    %2 = arith.truncf %1 : vector<8x784xf32> to vector<8x784xbf16>
    %c0_3 = arith.constant 0 : index
    %c0_4 = arith.constant 0 : index
    %3 = vector.load %arg2[%c0_3, %c0_4] : memref<784x128xbf16, #tpu.memory_space<vmem>>, vector<784x128xbf16>
    %cst = arith.constant dense<0.000000e+00> : vector<8x128xf32>
    %4 = tpu.matmul %2, %3, %cst {dimension_numbers = #tpu.dot_dimension_numbers<[1], [0], [0], [1], [0, 0, 1, 1], [], []>} : vector<8x784xbf16>, vector<784x128xbf16>, vector<8x128xf32> -> vector<8x128xf32>
    %5 = vector.extract_strided_slice %0 {offsets = [0, 0], sizes = [1, 128], strides = [1, 1]} : vector<16x128xf32> to vector<1x128xf32>
    %6 = vector.extract_strided_slice %0 {offsets = [1, 0], sizes = [1, 128], strides = [1, 1]} : vector<16x128xf32> to vector<1x128xf32>
    %7 = vector.extract_strided_slice %0 {offsets = [2, 0], sizes = [1, 128], strides = [1, 1]} : vector<16x128xf32> to vector<1x128xf32>
    %8 = vector.broadcast %5 : vector<1x128xf32> to vector<8x128xf32>
    %9 = arith.addf %4, %8 : vector<8x128xf32>
    %cst_5 = arith.constant dense<0.000000e+00> : vector<8xf32>
    %10 = vector.multi_reduction <add>, %9, %cst_5 [1] : vector<8x128xf32> to vector<8xf32>
    %11 = vector.shape_cast %10 : vector<8xf32> to vector<8x1xf32>
    %12 = arith.mulf %9, %9 : vector<8x128xf32>
    %cst_6 = arith.constant dense<0.000000e+00> : vector<8xf32>
    %13 = vector.multi_reduction <add>, %12, %cst_6 [1] : vector<8x128xf32> to vector<8xf32>
    %14 = vector.shape_cast %13 : vector<8xf32> to vector<8x1xf32>
    %cst_7 = arith.constant 0.0105263162 : f32
    %15 = vector.broadcast %cst_7 : f32 to vector<8x1xf32>
    %16 = arith.mulf %11, %15 : vector<8x1xf32>
    %cst_8 = arith.constant 0.0105263162 : f32
    %17 = vector.broadcast %cst_8 : f32 to vector<8x1xf32>
    %18 = arith.mulf %14, %17 : vector<8x1xf32>
    %19 = arith.mulf %16, %16 : vector<8x1xf32>
    %20 = arith.subf %18, %19 : vector<8x1xf32>
    %cst_9 = arith.constant 0.000000e+00 : f32
    %21 = vector.broadcast %cst_9 : f32 to vector<8x1xf32>
    %22 = arith.maximumf %20, %21 : vector<8x1xf32>
    %23 = vector.broadcast %16 : vector<8x1xf32> to vector<8x128xf32>
    %24 = arith.subf %9, %23 : vector<8x128xf32>
    %cst_10 = arith.constant 9.99999974E-6 : f32
    %25 = vector.broadcast %cst_10 : f32 to vector<8x1xf32>
    %26 = arith.addf %22, %25 : vector<8x1xf32>
    %27 = math.rsqrt %26 : vector<8x1xf32>
    %28 = vector.broadcast %27 : vector<8x1xf32> to vector<8x128xf32>
    %29 = arith.mulf %24, %28 : vector<8x128xf32>
    %30 = vector.broadcast %6 : vector<1x128xf32> to vector<8x128xf32>
    %31 = arith.mulf %29, %30 : vector<8x128xf32>
    %32 = vector.broadcast %7 : vector<1x128xf32> to vector<8x128xf32>
    %33 = arith.addf %31, %32 : vector<8x128xf32>
    %cst_11 = arith.constant 0.000000e+00 : f32
    %34 = vector.broadcast %cst_11 : f32 to vector<8x128xf32>
    %35 = arith.maximumf %33, %34 : vector<8x128xf32>
    %36 = arith.truncf %35 : vector<8x128xf32> to vector<8x128xbf16>
    %c0_12 = arith.constant 0 : index
    %c0_13 = arith.constant 0 : index
    %c0_14 = arith.constant 0 : index
    %37 = vector.load %arg3[%c0_12, %c0_13, %c0_14] : memref<4x128x128xbf16, #tpu.memory_space<vmem>>, vector<1x128x128xbf16>
    %38 = vector.shape_cast %37 : vector<1x128x128xbf16> to vector<128x128xbf16>
    %cst_15 = arith.constant dense<0.000000e+00> : vector<8x128xf32>
    %39 = tpu.matmul %36, %38, %cst_15 {dimension_numbers = #tpu.dot_dimension_numbers<[1], [0], [0], [1], [0, 0, 1, 1], [], []>} : vector<8x128xbf16>, vector<128x128xbf16>, vector<8x128xf32> -> vector<8x128xf32>
    %40 = vector.extract_strided_slice %0 {offsets = [3, 0], sizes = [1, 128], strides = [1, 1]} : vector<16x128xf32> to vector<1x128xf32>
    %41 = vector.extract_strided_slice %0 {offsets = [4, 0], sizes = [1, 128], strides = [1, 1]} : vector<16x128xf32> to vector<1x128xf32>
    %42 = vector.extract_strided_slice %0 {offsets = [5, 0], sizes = [1, 128], strides = [1, 1]} : vector<16x128xf32> to vector<1x128xf32>
    %43 = vector.broadcast %40 : vector<1x128xf32> to vector<8x128xf32>
    %44 = arith.addf %39, %43 : vector<8x128xf32>
    %cst_16 = arith.constant dense<0.000000e+00> : vector<8xf32>
    %45 = vector.multi_reduction <add>, %44, %cst_16 [1] : vector<8x128xf32> to vector<8xf32>
    %46 = vector.shape_cast %45 : vector<8xf32> to vector<8x1xf32>
    %47 = arith.mulf %44, %44 : vector<8x128xf32>
    %cst_17 = arith.constant dense<0.000000e+00> : vector<8xf32>
    %48 = vector.multi_reduction <add>, %47, %cst_17 [1] : vector<8x128xf32> to vector<8xf32>
    %49 = vector.shape_cast %48 : vector<8xf32> to vector<8x1xf32>
    %cst_18 = arith.constant 0.0111111114 : f32
    %50 = vector.broadcast %cst_18 : f32 to vector<8x1xf32>
    %51 = arith.mulf %46, %50 : vector<8x1xf32>
    %cst_19 = arith.constant 0.0111111114 : f32
    %52 = vector.broadcast %cst_19 : f32 to vector<8x1xf32>
    %53 = arith.mulf %49, %52 : vector<8x1xf32>
    %54 = arith.mulf %51, %51 : vector<8x1xf32>
    %55 = arith.subf %53, %54 : vector<8x1xf32>
    %cst_20 = arith.constant 0.000000e+00 : f32
    %56 = vector.broadcast %cst_20 : f32 to vector<8x1xf32>
    %57 = arith.maximumf %55, %56 : vector<8x1xf32>
    %58 = vector.broadcast %51 : vector<8x1xf32> to vector<8x128xf32>
    %59 = arith.subf %44, %58 : vector<8x128xf32>
    %cst_21 = arith.constant 9.99999974E-6 : f32
    %60 = vector.broadcast %cst_21 : f32 to vector<8x1xf32>
    %61 = arith.addf %57, %60 : vector<8x1xf32>
    %62 = math.rsqrt %61 : vector<8x1xf32>
    %63 = vector.broadcast %62 : vector<8x1xf32> to vector<8x128xf32>
    %64 = arith.mulf %59, %63 : vector<8x128xf32>
    %65 = vector.broadcast %41 : vector<1x128xf32> to vector<8x128xf32>
    %66 = arith.mulf %64, %65 : vector<8x128xf32>
    %67 = vector.broadcast %42 : vector<1x128xf32> to vector<8x128xf32>
    %68 = arith.addf %66, %67 : vector<8x128xf32>
    %cst_22 = arith.constant 0.000000e+00 : f32
    %69 = vector.broadcast %cst_22 : f32 to vector<8x128xf32>
    %70 = arith.maximumf %68, %69 : vector<8x128xf32>
    %71 = arith.truncf %70 : vector<8x128xf32> to vector<8x128xbf16>
    %c1 = arith.constant 1 : index
    %c0_23 = arith.constant 0 : index
    %c0_24 = arith.constant 0 : index
    %72 = vector.load %arg3[%c1, %c0_23, %c0_24] : memref<4x128x128xbf16, #tpu.memory_space<vmem>>, vector<1x128x128xbf16>
    %73 = vector.shape_cast %72 : vector<1x128x128xbf16> to vector<128x128xbf16>
    %cst_25 = arith.constant dense<0.000000e+00> : vector<8x128xf32>
    %74 = tpu.matmul %71, %73, %cst_25 {dimension_numbers = #tpu.dot_dimension_numbers<[1], [0], [0], [1], [0, 0, 1, 1], [], []>} : vector<8x128xbf16>, vector<128x128xbf16>, vector<8x128xf32> -> vector<8x128xf32>
    %75 = vector.extract_strided_slice %0 {offsets = [6, 0], sizes = [1, 128], strides = [1, 1]} : vector<16x128xf32> to vector<1x128xf32>
    %76 = vector.extract_strided_slice %0 {offsets = [7, 0], sizes = [1, 128], strides = [1, 1]} : vector<16x128xf32> to vector<1x128xf32>
    %77 = vector.extract_strided_slice %0 {offsets = [8, 0], sizes = [1, 128], strides = [1, 1]} : vector<16x128xf32> to vector<1x128xf32>
    %78 = vector.broadcast %75 : vector<1x128xf32> to vector<8x128xf32>
    %79 = arith.addf %74, %78 : vector<8x128xf32>
    %cst_26 = arith.constant dense<0.000000e+00> : vector<8xf32>
    %80 = vector.multi_reduction <add>, %79, %cst_26 [1] : vector<8x128xf32> to vector<8xf32>
    %81 = vector.shape_cast %80 : vector<8xf32> to vector<8x1xf32>
    %82 = arith.mulf %79, %79 : vector<8x128xf32>
    %cst_27 = arith.constant dense<0.000000e+00> : vector<8xf32>
    %83 = vector.multi_reduction <add>, %82, %cst_27 [1] : vector<8x128xf32> to vector<8xf32>
    %84 = vector.shape_cast %83 : vector<8xf32> to vector<8x1xf32>
    %cst_28 = arith.constant 0.0114942528 : f32
    %85 = vector.broadcast %cst_28 : f32 to vector<8x1xf32>
    %86 = arith.mulf %81, %85 : vector<8x1xf32>
    %cst_29 = arith.constant 0.0114942528 : f32
    %87 = vector.broadcast %cst_29 : f32 to vector<8x1xf32>
    %88 = arith.mulf %84, %87 : vector<8x1xf32>
    %89 = arith.mulf %86, %86 : vector<8x1xf32>
    %90 = arith.subf %88, %89 : vector<8x1xf32>
    %cst_30 = arith.constant 0.000000e+00 : f32
    %91 = vector.broadcast %cst_30 : f32 to vector<8x1xf32>
    %92 = arith.maximumf %90, %91 : vector<8x1xf32>
    %93 = vector.broadcast %86 : vector<8x1xf32> to vector<8x128xf32>
    %94 = arith.subf %79, %93 : vector<8x128xf32>
    %cst_31 = arith.constant 9.99999974E-6 : f32
    %95 = vector.broadcast %cst_31 : f32 to vector<8x1xf32>
    %96 = arith.addf %92, %95 : vector<8x1xf32>
    %97 = math.rsqrt %96 : vector<8x1xf32>
    %98 = vector.broadcast %97 : vector<8x1xf32> to vector<8x128xf32>
    %99 = arith.mulf %94, %98 : vector<8x128xf32>
    %100 = vector.broadcast %76 : vector<1x128xf32> to vector<8x128xf32>
    %101 = arith.mulf %99, %100 : vector<8x128xf32>
    %102 = vector.broadcast %77 : vector<1x128xf32> to vector<8x128xf32>
    %103 = arith.addf %101, %102 : vector<8x128xf32>
    %cst_32 = arith.constant 0.000000e+00 : f32
    %104 = vector.broadcast %cst_32 : f32 to vector<8x128xf32>
    %105 = arith.maximumf %103, %104 : vector<8x128xf32>
    %106 = arith.truncf %105 : vector<8x128xf32> to vector<8x128xbf16>
    %c2 = arith.constant 2 : index
    %c0_33 = arith.constant 0 : index
    %c0_34 = arith.constant 0 : index
    %107 = vector.load %arg3[%c2, %c0_33, %c0_34] : memref<4x128x128xbf16, #tpu.memory_space<vmem>>, vector<1x128x128xbf16>
    %108 = vector.shape_cast %107 : vector<1x128x128xbf16> to vector<128x128xbf16>
    %cst_35 = arith.constant dense<0.000000e+00> : vector<8x128xf32>
    %109 = tpu.matmul %106, %108, %cst_35 {dimension_numbers = #tpu.dot_dimension_numbers<[1], [0], [0], [1], [0, 0, 1, 1], [], []>} : vector<8x128xbf16>, vector<128x128xbf16>, vector<8x128xf32> -> vector<8x128xf32>
    %110 = vector.extract_strided_slice %0 {offsets = [9, 0], sizes = [1, 128], strides = [1, 1]} : vector<16x128xf32> to vector<1x128xf32>
    %111 = vector.extract_strided_slice %0 {offsets = [10, 0], sizes = [1, 128], strides = [1, 1]} : vector<16x128xf32> to vector<1x128xf32>
    %112 = vector.extract_strided_slice %0 {offsets = [11, 0], sizes = [1, 128], strides = [1, 1]} : vector<16x128xf32> to vector<1x128xf32>
    %113 = vector.broadcast %110 : vector<1x128xf32> to vector<8x128xf32>
    %114 = arith.addf %109, %113 : vector<8x128xf32>
    %cst_36 = arith.constant dense<0.000000e+00> : vector<8xf32>
    %115 = vector.multi_reduction <add>, %114, %cst_36 [1] : vector<8x128xf32> to vector<8xf32>
    %116 = vector.shape_cast %115 : vector<8xf32> to vector<8x1xf32>
    %117 = arith.mulf %114, %114 : vector<8x128xf32>
    %cst_37 = arith.constant dense<0.000000e+00> : vector<8xf32>
    %118 = vector.multi_reduction <add>, %117, %cst_37 [1] : vector<8x128xf32> to vector<8xf32>
    %119 = vector.shape_cast %118 : vector<8xf32> to vector<8x1xf32>
    %cst_38 = arith.constant 0.0121951215 : f32
    %120 = vector.broadcast %cst_38 : f32 to vector<8x1xf32>
    %121 = arith.mulf %116, %120 : vector<8x1xf32>
    %cst_39 = arith.constant 0.0121951215 : f32
    %122 = vector.broadcast %cst_39 : f32 to vector<8x1xf32>
    %123 = arith.mulf %119, %122 : vector<8x1xf32>
    %124 = arith.mulf %121, %121 : vector<8x1xf32>
    %125 = arith.subf %123, %124 : vector<8x1xf32>
    %cst_40 = arith.constant 0.000000e+00 : f32
    %126 = vector.broadcast %cst_40 : f32 to vector<8x1xf32>
    %127 = arith.maximumf %125, %126 : vector<8x1xf32>
    %128 = vector.broadcast %121 : vector<8x1xf32> to vector<8x128xf32>
    %129 = arith.subf %114, %128 : vector<8x128xf32>
    %cst_41 = arith.constant 9.99999974E-6 : f32
    %130 = vector.broadcast %cst_41 : f32 to vector<8x1xf32>
    %131 = arith.addf %127, %130 : vector<8x1xf32>
    %132 = math.rsqrt %131 : vector<8x1xf32>
    %133 = vector.broadcast %132 : vector<8x1xf32> to vector<8x128xf32>
    %134 = arith.mulf %129, %133 : vector<8x128xf32>
    %135 = vector.broadcast %111 : vector<1x128xf32> to vector<8x128xf32>
    %136 = arith.mulf %134, %135 : vector<8x128xf32>
    %137 = vector.broadcast %112 : vector<1x128xf32> to vector<8x128xf32>
    %138 = arith.addf %136, %137 : vector<8x128xf32>
    %cst_42 = arith.constant 0.000000e+00 : f32
    %139 = vector.broadcast %cst_42 : f32 to vector<8x128xf32>
    %140 = arith.maximumf %138, %139 : vector<8x128xf32>
    %141 = arith.truncf %140 : vector<8x128xf32> to vector<8x128xbf16>
    %c3 = arith.constant 3 : index
    %c0_43 = arith.constant 0 : index
    %c0_44 = arith.constant 0 : index
    %142 = vector.load %arg3[%c3, %c0_43, %c0_44] : memref<4x128x128xbf16, #tpu.memory_space<vmem>>, vector<1x128x128xbf16>
    %143 = vector.shape_cast %142 : vector<1x128x128xbf16> to vector<128x128xbf16>
    %cst_45 = arith.constant dense<0.000000e+00> : vector<8x128xf32>
    %144 = tpu.matmul %141, %143, %cst_45 {dimension_numbers = #tpu.dot_dimension_numbers<[1], [0], [0], [1], [0, 0, 1, 1], [], []>} : vector<8x128xbf16>, vector<128x128xbf16>, vector<8x128xf32> -> vector<8x128xf32>
    %145 = vector.extract_strided_slice %0 {offsets = [12, 0], sizes = [1, 128], strides = [1, 1]} : vector<16x128xf32> to vector<1x128xf32>
    %146 = vector.broadcast %145 : vector<1x128xf32> to vector<8x128xf32>
    %147 = arith.addf %144, %146 : vector<8x128xf32>
    %148 = vector.extract_strided_slice %147 {offsets = [0, 0], sizes = [8, 10], strides = [1, 1]} : vector<8x128xf32> to vector<8x10xf32>
    %c0_46 = arith.constant 0 : index
    %c0_47 = arith.constant 0 : index
    %149 = vector.load %arg5[%c0_46, %c0_47] : memref<8x10xf32, #tpu.memory_space<vmem>>, vector<8x10xf32>
    tpu.vector_store %arg5[%c0_46, %c0_47], %148 {strides = array<i32>} : memref<8x10xf32, #tpu.memory_space<vmem>>, vector<8x10xf32>,
    return
  }
  func.func @transform_0(%arg0: i32) -> (i32, i32) {
    %c0_i32 = arith.constant 0 : i32
    %c0_i32_0 = arith.constant 0 : i32
    return %arg0, %c0_i32 : i32, i32
  }
  func.func @transform_1(%arg0: i32) -> (i32, i32) {
    %c0_i32 = arith.constant 0 : i32
    %c0_i32_0 = arith.constant 0 : i32
    %c0_i32_1 = arith.constant 0 : i32
    return %c0_i32, %c0_i32_0 : i32, i32
  }
  func.func @transform_2(%arg0: i32) -> (i32, i32, i32) {
    %c0_i32 = arith.constant 0 : i32
    %c0_i32_0 = arith.constant 0 : i32
    %c0_i32_1 = arith.constant 0 : i32
    %c0_i32_2 = arith.constant 0 : i32
    return %c0_i32, %c0_i32_0, %c0_i32_1 : i32, i32, i32
  }
  func.func @transform_3(%arg0: i32) -> (i32, i32) {
    %c0_i32 = arith.constant 0 : i32
    %c0_i32_0 = arith.constant 0 : i32
    %c0_i32_1 = arith.constant 0 : i32
    return %c0_i32, %c0_i32_0 : i32, i32
  }
  func.func @transform_4(%arg0: i32) -> (i32, i32) {
    %c0_i32 = arith.constant 0 : i32
    %c0_i32_0 = arith.constant 0 : i32
    return %arg0, %c0_i32 : i32, i32
  }
}

</mosaic_0001>

<llo_original>
// kernel: bad_vgg_dec_active_forward.1
$region0: #{bad_vgg_dec_active_forward.1}
  #allocation0 [shape = 'u32[]', space=smem, size = 0x4, offset = 0x4, fixed_abs, tag = 'smem constant byte address 0x4 - core index']
  #allocation1 [shape = 'u32[144,128]{1,0:T(1,128)}', space=vmem, size = 0x12000, scoped, tag = 'internal scratch']
  %s0 = inlined_call_operand.vmem [shape: f32[8,784], index: 0, kind: input, shape index: {}]
  %s1 = inlined_call_operand.vmem [shape: bf16[784,128], index: 1, kind: input, shape index: {}]
  %s2 = inlined_call_operand.vmem [shape: bf16[4,128,128], index: 2, kind: input, shape index: {}]
  %s3 = inlined_call_operand.vmem [shape: f32[16,128], index: 3, kind: input, shape index: {}]
  %s4 = inlined_call_operand.hbm [shape: f32[8,10], index: 4, kind: output, shape index: {}]
  %s5 = sld [smem:[#allocation0]]
  $region26: #{bad_vgg_dec_active_forward.1} parent=0
    _
  %s7 = ssub.s32 1, %s5
  %s8 = scalar_select 0, %s7, %s5
  $region1: #{bad_vgg_dec_active_forward.1} parent=0
    #allocation2 [shape = 'u8[4096]{0}', space=vmem, size = 0x1000, scoped, tag = 'output window, operand 0, single buffered']
    #allocation3 [shape = 's32[1]{0}', space=sflag, size = 0x4, scoped, tag = 'scoped memory for bad_vgg_dec_active_forward.1']
    %9 = vsyncpa [#allocation3], 0
    // Predicated region
    $region2: #{bad_vgg_dec_active_forward.1} parent=1 // pred_check
      _
    $region3: #{bad_vgg_dec_active_forward.1} parent=1 // pred_check_branch
      %11 = sbr.rel (0) target = $region5
    $region4: #{bad_vgg_dec_active_forward.1} parent=1 // pred_region
      _
    $region5: #{bad_vgg_dec_active_forward.1} parent=1 // pred_fallthru
      _
    // Predicated region
    $region6: #{bad_vgg_dec_active_forward.1} parent=1 // pred_check
      _
    $region7: #{bad_vgg_dec_active_forward.1} parent=1 // pred_check_branch
      %13 = sbr.rel (0) target = $region9
    $region8: #{bad_vgg_dec_active_forward.1} parent=1 // pred_region
      _
    $region9: #{bad_vgg_dec_active_forward.1} parent=1 // pred_fallthru
      _
    // Predicated region
    $region10: #{bad_vgg_dec_active_forward.1} parent=1 // pred_check
      _
    $region11: #{bad_vgg_dec_active_forward.1} parent=1 // pred_check_branch
      %15 = sbr.rel (0) target = $region13
    $region12: #{bad_vgg_dec_active_forward.1} parent=1 // pred_region
      _
    $region13: #{bad_vgg_dec_active_forward.1} parent=1 // pred_fallthru
      _
    // Predicated region
    $region14: #{bad_vgg_dec_active_forward.1} parent=1 // pred_check
      _
    $region15: #{bad_vgg_dec_active_forward.1} parent=1 // pred_check_branch
      %17 = sbr.rel (0) target = $region17
    $region16: #{bad_vgg_dec_active_forward.1} parent=1 // pred_region
      _
    $region17: #{bad_vgg_dec_active_forward.1} parent=1 // pred_fallthru
      _
    %v19 = vld [vmem:[%s3] sm:$0xff]
    %v20 = vld [vmem:[%s3 + $0x8] sm:$0xff]
    %v21 = vld [vmem:[%s0] sm:$0xff]
    %v22 = vld [vmem:[%s0 + $0x8] sm:$0xff]
    %v23 = vld [vmem:[%s0 + $0x10] sm:$0xff]
    %v24 = vld [vmem:[%s0 + $0x18] sm:$0xff]
    %v25 = vld [vmem:[%s0 + $0x20] sm:$0xff]
    %v26 = vld [vmem:[%s0 + $0x28] sm:$0xff]
    %v27 = vld [vmem:[%s0 + $0x30] sm:$0xff]
    %v28 = vpack.c.bf16 %v21, %v21
    %v29 = vpack.c.bf16 %v22, %v22
    %v30 = vpack.c.bf16 %v23, %v23
    %v31 = vpack.c.bf16 %v24, %v24
    %v32 = vpack.c.bf16 %v25, %v25
    %v33 = vpack.c.bf16 %v26, %v26
    %v34 = vpack.c.bf16 %v27, %v27
    %v35 = vld [vmem:[%s1] sm:$0xf]
    %v36 = vld [vmem:[%s1 + $0x4] sm:$0xf]
    %v37 = vld [vmem:[%s1 + $0x8] sm:$0xf]
    %v38 = vld [vmem:[%s1 + $0xc] sm:$0xf]
    %v39 = vld [vmem:[%s1 + $0x10] sm:$0xf]
    %v40 = vld [vmem:[%s1 + $0x14] sm:$0xf]
    %v41 = vld [vmem:[%s1 + $0x18] sm:$0xf]
    %v42 = vld [vmem:[%s1 + $0x1c] sm:$0xf]
    %v43 = vld [vmem:[%s1 + $0x20] sm:$0xf]
    %v44 = vld [vmem:[%s1 + $0x24] sm:$0xf]
    %v45 = vld [vmem:[%s1 + $0x28] sm:$0xf]
    %v46 = vld [vmem:[%s1 + $0x2c] sm:$0xf]
    %v47 = vld [vmem:[%s1 + $0x30] sm:$0xf]
    %v48 = vld [vmem:[%s1 + $0x34] sm:$0xf]
    %v49 = vld [vmem:[%s1 + $0x38] sm:$0xf]
    %v50 = vld [vmem:[%s1 + $0x3c] sm:$0xf]
    %v51 = vld [vmem:[%s1 + $0x40] sm:$0xf]
    %v52 = vld [vmem:[%s1 + $0x44] sm:$0xf]
    %v53 = vld [vmem:[%s1 + $0x48] sm:$0xf]
    %v54 = vld [vmem:[%s1 + $0x4c] sm:$0xf]
    %v55 = vld [vmem:[%s1 + $0x50] sm:$0xf]
    %v56 = vld [vmem:[%s1 + $0x54] sm:$0xf]
    %v57 = vld [vmem:[%s1 + $0x58] sm:$0xf]
    %v58 = vld [vmem:[%s1 + $0x5c] sm:$0xf]
    %v59 = vld [vmem:[%s1 + $0x60] sm:$0xf]
    %v60 = vld [vmem:[%s1 + $0x64] sm:$0xf]
    %v61 = vld [vmem:[%s1 + $0x68] sm:$0xf]
    %v62 = vld [vmem:[%s1 + $0x6c] sm:$0xf]
    %v63 = vld [vmem:[%s1 + $0x70] sm:$0xf]
    %v64 = vld [vmem:[%s1 + $0x74] sm:$0xf]
    %v65 = vld [vmem:[%s1 + $0x78] sm:$0xf]
    %v66 = vld [vmem:[%s1 + $0x7c] sm:$0xf]
    %v67 = vld [vmem:[%s1 + $0x80] sm:$0xf]
    %v68 = vld [vmem:[%s1 + $0x84] sm:$0xf]
    %v69 = vld [vmem:[%s1 + $0x88] sm:$0xf]
    %v70 = vld [vmem:[%s1 + $0x8c] sm:$0xf]
    %v71 = vld [vmem:[%s1 + $0x90] sm:$0xf]
    %v72 = vld [vmem:[%s1 + $0x94] sm:$0xf]
    %v73 = vld [vmem:[%s1 + $0x98] sm:$0xf]
    %v74 = vld [vmem:[%s1 + $0x9c] sm:$0xf]
    %v75 = vld [vmem:[%s1 + $0xa0] sm:$0xf]
    %v76 = vld [vmem:[%s1 + $0xa4] sm:$0xf]
    %v77 = vld [vmem:[%s1 + $0xa8] sm:$0xf]
    %v78 = vld [vmem:[%s1 + $0xac] sm:$0xf]
    %v79 = vld [vmem:[%s1 + $0xb0] sm:$0xf]
    %v80 = vld [vmem:[%s1 + $0xb4] sm:$0xf]
    %v81 = vld [vmem:[%s1 + $0xb8] sm:$0xf]
    %v82 = vld [vmem:[%s1 + $0xbc] sm:$0xf]
    %v83 = vld [vmem:[%s1 + $0xc0] sm:$0xf]
    %v84 = vld [vmem:[%s1 + $0xc4] sm:$0xf]
    %v85 = vld [vmem:[%s1 + $0xc8] sm:$0xf]
    %v86 = vld [vmem:[%s1 + $0xcc] sm:$0xf]
    %v87 = vld [vmem:[%s1 + $0xd0] sm:$0xf]
    %v88 = vld [vmem:[%s1 + $0xd4] sm:$0xf]
    %v89 = vld [vmem:[%s1 + $0xd8] sm:$0xf]
    %v90 = vld [vmem:[%s1 + $0xdc] sm:$0xf]
    %v91 = vld [vmem:[%s1 + $0xe0] sm:$0xf]
    %v92 = vld [vmem:[%s1 + $0xe4] sm:$0xf]
    %v93 = vld [vmem:[%s1 + $0xe8] sm:$0xf]
    %v94 = vld [vmem:[%s1 + $0xec] sm:$0xf]
    %v95 = vld [vmem:[%s1 + $0xf0] sm:$0xf]
    %v96 = vld [vmem:[%s1 + $0xf4] sm:$0xf]
    %v97 = vld [vmem:[%s1 + $0xf8] sm:$0xf]
    %v98 = vld [vmem:[%s1 + $0xfc] sm:$0xf]
    %v99 = vld [vmem:[%s1 + $0x100] sm:$0xf]
    %v100 = vld [vmem:[%s1 + $0x104] sm:$0xf]
    %v101 = vld [vmem:[%s1 + $0x108] sm:$0xf]
    %v102 = vld [vmem:[%s1 + $0x10c] sm:$0xf]
    %v103 = vld [vmem:[%s1 + $0x110] sm:$0xf]
    %v104 = vld [vmem:[%s1 + $0x114] sm:$0xf]
    %v105 = vld [vmem:[%s1 + $0x118] sm:$0xf]
    %v106 = vld [vmem:[%s1 + $0x11c] sm:$0xf]
    %v107 = vld [vmem:[%s1 + $0x120] sm:$0xf]
    %v108 = vld [vmem:[%s1 + $0x124] sm:$0xf]
    %v109 = vld [vmem:[%s1 + $0x128] sm:$0xf]
    %v110 = vld [vmem:[%s1 + $0x12c] sm:$0xf]
    %v111 = vld [vmem:[%s1 + $0x130] sm:$0xf]
    %v112 = vld [vmem:[%s1 + $0x134] sm:$0xf]
    %v113 = vld [vmem:[%s1 + $0x138] sm:$0xf]
    %v114 = vld [vmem:[%s1 + $0x13c] sm:$0xf]
    %v115 = vld [vmem:[%s1 + $0x140] sm:$0xf]
    %v116 = vld [vmem:[%s1 + $0x144] sm:$0xf]
    %v117 = vld [vmem:[%s1 + $0x148] sm:$0xf]
    %v118 = vld [vmem:[%s1 + $0x14c] sm:$0xf]
    %v119 = vld [vmem:[%s1 + $0x150] sm:$0xf]
    %v120 = vld [vmem:[%s1 + $0x154] sm:$0xf]
    %v121 = vld [vmem:[%s1 + $0x158] sm:$0xf]
    %v122 = vld [vmem:[%s1 + $0x15c] sm:$0xf]
    %v123 = vld [vmem:[%s1 + $0x160] sm:$0xf]
    %v124 = vld [vmem:[%s1 + $0x164] sm:$0xf]
    %v125 = vld [vmem:[%s1 + $0x168] sm:$0xf]
    %v126 = vld [vmem:[%s1 + $0x16c] sm:$0xf]
    %v127 = vld [vmem:[%s1 + $0x170] sm:$0xf]
    %v128 = vld [vmem:[%s1 + $0x174] sm:$0xf]
    %v129 = vld [vmem:[%s1 + $0x178] sm:$0xf]
    %v130 = vld [vmem:[%s1 + $0x17c] sm:$0xf]
    %v131 = vld [vmem:[%s1 + $0x180] sm:$0xf]
    %v132 = vld [vmem:[%s1 + $0x184] sm:$0xf]
    %v133 = vlaneseq
    %v134 = vshrl.u32 %v133, 7
    %v135 = vsub.s32 0, %v134
    %v136 = vrot.slane %v19, %v135
    %v235 = vunpack.c.l.b16 %v35
    %v236 = vunpack.c.l.b16 %v36
    %v237 = vunpack.c.l.b16 %v37
    %v238 = vunpack.c.l.b16 %v38
    %v239 = vunpack.c.l.b16 %v39
    %v240 = vunpack.c.l.b16 %v40
    %v241 = vunpack.c.l.b16 %v41
    %v242 = vunpack.c.l.b16 %v42
    %v243 = vunpack.c.l.b16 %v43
    %v244 = vunpack.c.l.b16 %v44
    %v245 = vunpack.c.l.b16 %v45
    %v246 = vunpack.c.l.b16 %v46
    %v247 = vunpack.c.l.b16 %v47
    %v248 = vunpack.c.l.b16 %v48
    %v249 = vunpack.c.l.b16 %v49
    %v250 = vunpack.c.l.b16 %v50
    %v251 = vunpack.c.l.b16 %v51
    %v252 = vunpack.c.l.b16 %v52
    %v253 = vunpack.c.l.b16 %v53
    %v254 = vunpack.c.l.b16 %v54
    %v255 = vunpack.c.l.b16 %v55
    %v256 = vunpack.c.l.b16 %v56
    %v257 = vunpack.c.l.b16 %v57
    %v258 = vunpack.c.l.b16 %v58
    %v259 = vunpack.c.l.b16 %v59
    %v260 = vunpack.c.l.b16 %v60
    %v261 = vunpack.c.l.b16 %v61
    %v262 = vunpack.c.l.b16 %v62
    %v263 = vunpack.c.l.b16 %v63
    %v264 = vunpack.c.l.b16 %v64
    %v265 = vunpack.c.l.b16 %v65
    %v266 = vunpack.c.l.b16 %v66
    %v267 = vunpack.c.l.b16 %v67
    %v268 = vunpack.c.l.b16 %v68
    %v269 = vunpack.c.l.b16 %v69
    %v270 = vunpack.c.l.b16 %v70
    %v271 = vunpack.c.l.b16 %v71
    %v272 = vunpack.c.l.b16 %v72
    %v273 = vunpack.c.l.b16 %v73
    %v274 = vunpack.c.l.b16 %v74
    %v275 = vunpack.c.l.b16 %v75
    %v276 = vunpack.c.l.b16 %v76
    %v277 = vunpack.c.l.b16 %v77
    %v278 = vunpack.c.l.b16 %v78
    %v279 = vunpack.c.l.b16 %v79
    %v280 = vunpack.c.l.b16 %v80
    %v281 = vunpack.c.l.b16 %v81
    %v282 = vunpack.c.l.b16 %v82
    %v283 = vunpack.c.l.b16 %v83
    %v284 = vunpack.c.l.b16 %v84
    %v285 = vunpack.c.l.b16 %v85
    %v286 = vunpack.c.l.b16 %v86
    %v287 = vunpack.c.l.b16 %v87
    %v288 = vunpack.c.l.b16 %v88
    %v289 = vunpack.c.l.b16 %v89
    %v290 = vunpack.c.l.b16 %v90
    %v291 = vunpack.c.l.b16 %v91
    %v292 = vunpack.c.l.b16 %v92
    %v293 = vunpack.c.l.b16 %v93
    %v294 = vunpack.c.l.b16 %v94
    %v295 = vunpack.c.l.b16 %v95
    %v296 = vunpack.c.l.b16 %v96
    %v297 = vunpack.c.l.b16 %v97
    %v298 = vunpack.c.l.b16 %v98
    %v299 = vunpack.c.l.b16 %v99
    %v300 = vunpack.c.l.b16 %v100
    %v301 = vunpack.c.l.b16 %v101
    %v302 = vunpack.c.l.b16 %v102
    %v303 = vunpack.c.l.b16 %v103
    %v304 = vunpack.c.l.b16 %v104
    %v305 = vunpack.c.l.b16 %v105
    %v306 = vunpack.c.l.b16 %v106
    %v307 = vunpack.c.l.b16 %v107
    %v308 = vunpack.c.l.b16 %v108
    %v309 = vunpack.c.l.b16 %v109
    %v310 = vunpack.c.l.b16 %v110
    %v311 = vunpack.c.l.b16 %v111
    %v312 = vunpack.c.l.b16 %v112
    %v313 = vunpack.c.l.b16 %v113
    %v314 = vunpack.c.l.b16 %v114
    %v315 = vunpack.c.l.b16 %v115
    %v316 = vunpack.c.l.b16 %v116
    %v317 = vunpack.c.l.b16 %v117
    %v318 = vunpack.c.l.b16 %v118
    %v319 = vunpack.c.l.b16 %v119
    %v320 = vunpack.c.l.b16 %v120
    %v321 = vunpack.c.l.b16 %v121
    %v322 = vunpack.c.l.b16 %v122
    %v323 = vunpack.c.l.b16 %v123
    %v324 = vunpack.c.l.b16 %v124
    %v325 = vunpack.c.l.b16 %v125
    %v326 = vunpack.c.l.b16 %v126
    %v327 = vunpack.c.l.b16 %v127
    %v328 = vunpack.c.l.b16 %v128
    %v329 = vunpack.c.l.b16 %v129
    %v330 = vunpack.c.l.b16 %v130
    %v331 = vunpack.c.l.b16 %v131
    %v332 = vunpack.c.l.b16 %v132
    %v333 = vpack.c.b16 %v236, %v235
    %v334 = vpack.c.b16 %v238, %v237
    %v335 = vpack.c.b16 %v240, %v239
    %v336 = vpack.c.b16 %v242, %v241
    %v337 = vpack.c.b16 %v244, %v243
    %v338 = vpack.c.b16 %v246, %v245
    %v339 = vpack.c.b16 %v248, %v247
    %v340 = vpack.c.b16 %v250, %v249
    %v341 = vpack.c.b16 %v252, %v251
    %v342 = vpack.c.b16 %v254, %v253
    %v343 = vpack.c.b16 %v256, %v255
    %v344 = vpack.c.b16 %v258, %v257
    %v345 = vpack.c.b16 %v260, %v259
    %v346 = vpack.c.b16 %v262, %v261
    %v347 = vpack.c.b16 %v264, %v263
    %v348 = vpack.c.b16 %v266, %v265
    %v349 = vpack.c.b16 %v268, %v267
    %v350 = vpack.c.b16 %v270, %v269
    %v351 = vpack.c.b16 %v272, %v271
    %v352 = vpack.c.b16 %v274, %v273
    %v353 = vpack.c.b16 %v276, %v275
    %v354 = vpack.c.b16 %v278, %v277
    %v355 = vpack.c.b16 %v280, %v279
    %v356 = vpack.c.b16 %v282, %v281
    %v357 = vpack.c.b16 %v284, %v283
    %v358 = vpack.c.b16 %v286, %v285
    %v359 = vpack.c.b16 %v288, %v287
    %v360 = vpack.c.b16 %v290, %v289
    %v361 = vpack.c.b16 %v292, %v291
    %v362 = vpack.c.b16 %v294, %v293
    %v363 = vpack.c.b16 %v296, %v295
    %v364 = vpack.c.b16 %v298, %v297
    %v365 = vpack.c.b16 %v300, %v299
    %v366 = vpack.c.b16 %v302, %v301
    %v367 = vpack.c.b16 %v304, %v303
    %v368 = vpack.c.b16 %v306, %v305
    %v369 = vpack.c.b16 %v308, %v307
    %v370 = vpack.c.b16 %v310, %v309
    %v371 = vpack.c.b16 %v312, %v311
    %v372 = vpack.c.b16 %v314, %v313
    %v373 = vpack.c.b16 %v316, %v315
    %v374 = vpack.c.b16 %v318, %v317
    %v375 = vpack.c.b16 %v320, %v319
    %v376 = vpack.c.b16 %v322, %v321
    %v377 = vpack.c.b16 %v324, %v323
    %v378 = vpack.c.b16 %v326, %v325
    %v379 = vpack.c.b16 %v328, %v327
    %v380 = vpack.c.b16 %v330, %v329
    %v381 = vpack.c.b16 %v332, %v331
    %vm431 = vcmask 130048
    %v433 = vsel %vm431, %v34, 0
    %435 = vmatprep.subr.bf16.mxu0 0
    %436 = vmatpush1.bf16.msra.mxu0 %v340
    %437 = vmatprep.subr.bf16.mxu0 0
    %438 = vmatpush1.bf16.msra.mxu0 %v339
    %439 = vmatprep.subr.bf16.mxu0 0
    %440 = vmatpush1.bf16.msra.mxu0 %v338
    %441 = vmatprep.subr.bf16.mxu0 0
    %442 = vmatpush1.bf16.msra.mxu0 %v337
    %443 = vmatprep.subr.bf16.mxu0 0
    %444 = vmatpush1.bf16.msra.mxu0 %v336
    %445 = vmatprep.subr.bf16.mxu0 0
    %446 = vmatpush1.bf16.msra.mxu0 %v335
    %447 = vmatprep.subr.bf16.mxu0 0
    %448 = vmatpush1.bf16.msra.mxu0 %v334
    %449 = vmatprep.subr.bf16.mxu0 0
    %450 = vmatpush1.bf16.msra.mxu0 %v333
    %451 = vmatprep.subr.bf16.mxu0 0
    %452 = vmatpush2.bf16.msra.mxu0 %v348
    %453 = vmatprep.subr.bf16.mxu0 0
    %454 = vmatpush2.bf16.msra.mxu0 %v347
    %455 = vmatprep.subr.bf16.mxu0 0
    %456 = vmatpush2.bf16.msra.mxu0 %v346
    %457 = vmatprep.subr.bf16.mxu0 0
    %458 = vmatpush2.bf16.msra.mxu0 %v345
    %459 = vmatprep.subr.bf16.mxu0 0
    %460 = vmatpush2.bf16.msra.mxu0 %v344
    %461 = vmatprep.subr.bf16.mxu0 0
    %462 = vmatpush2.bf16.msra.mxu0 %v343
    %463 = vmatprep.subr.bf16.mxu0 0
    %464 = vmatpush2.bf16.msra.mxu0 %v342
    %465 = vmatprep.subr.bf16.mxu0 0
    %466 = vmatpush2.bf16.msra.mxu0 %v341
    %467 = vmatprep.mubr.bf16.mxu0 %v29
    %468 = vmatmul.mubr.bf16.gmra.mxu0 %v28
    %v469 = vpop.f32.mrf.mxu0
    %v470 = vadd.f32 %v136, %v469
    %v471 = vpop.f32.mrf.mxu0
    %v472 = vpop.f32.mrf.mxu0
    %v473 = vpop.f32.mrf.mxu0
    %474 = vdwg.mxu0
    %475 = vmatprep.subr.bf16.mxu0 0
    %476 = vmatpush1.bf16.msra.mxu0 %v356
    %477 = vmatprep.subr.bf16.mxu0 0
    %478 = vmatpush1.bf16.msra.mxu0 %v355
    %479 = vmatprep.subr.bf16.mxu0 0
    %480 = vmatpush1.bf16.msra.mxu0 %v354
    %481 = vmatprep.subr.bf16.mxu0 0
    %482 = vmatpush1.bf16.msra.mxu0 %v353
    %483 = vmatprep.subr.bf16.mxu0 0
    %484 = vmatpush1.bf16.msra.mxu0 %v352
    %485 = vmatprep.subr.bf16.mxu0 0
    %486 = vmatpush1.bf16.msra.mxu0 %v351
    %487 = vmatprep.subr.bf16.mxu0 0
    %488 = vmatpush1.bf16.msra.mxu0 %v350
    %489 = vmatprep.subr.bf16.mxu0 0
    %490 = vmatpush1.bf16.msra.mxu0 %v349
    %491 = vmatprep.subr.bf16.mxu0 0
    %492 = vmatpush2.bf16.msra.mxu0 %v364
    %493 = vmatprep.subr.bf16.mxu0 0
    %494 = vmatpush2.bf16.msra.mxu0 %v363
    %495 = vmatprep.subr.bf16.mxu0 0
    %496 = vmatpush2.bf16.msra.mxu0 %v362
    %497 = vmatprep.subr.bf16.mxu0 0
    %498 = vmatpush2.bf16.msra.mxu0 %v361
    %499 = vmatprep.subr.bf16.mxu0 0
    %500 = vmatpush2.bf16.msra.mxu0 %v360
    %501 = vmatprep.subr.bf16.mxu0 0
    %502 = vmatpush2.bf16.msra.mxu0 %v359
    %503 = vmatprep.subr.bf16.mxu0 0
    %504 = vmatpush2.bf16.msra.mxu0 %v358
    %505 = vmatprep.subr.bf16.mxu0 0
    %506 = vmatpush2.bf16.msra.mxu0 %v357
    %507 = vmatprep.mubr.bf16.mxu0 %v31
    %508 = vmatmul.mubr.bf16.gmra.mxu0 %v30
    %v509 = vpop.f32.mrf.mxu0
    %v510 = vadd.f32 %v470, %v509
    %v511 = vpop.f32.mrf.mxu0
    %v512 = vpop.f32.mrf.mxu0
    %v513 = vpop.f32.mrf.mxu0
    %514 = vdwg.mxu0
    %515 = vmatprep.subr.bf16.mxu0 0
    %516 = vmatpush1.bf16.msra.mxu0 %v372
    %517 = vmatprep.subr.bf16.mxu0 0
    %518 = vmatpush1.bf16.msra.mxu0 %v371
    %519 = vmatprep.subr.bf16.mxu0 0
    %520 = vmatpush1.bf16.msra.mxu0 %v370
    %521 = vmatprep.subr.bf16.mxu0 0
    %522 = vmatpush1.bf16.msra.mxu0 %v369
    %523 = vmatprep.subr.bf16.mxu0 0
    %524 = vmatpush1.bf16.msra.mxu0 %v368
    %525 = vmatprep.subr.bf16.mxu0 0
    %526 = vmatpush1.bf16.msra.mxu0 %v367
    %527 = vmatprep.subr.bf16.mxu0 0
    %528 = vmatpush1.bf16.msra.mxu0 %v366
    %529 = vmatprep.subr.bf16.mxu0 0
    %530 = vmatpush1.bf16.msra.mxu0 %v365
    %531 = vmatprep.subr.bf16.mxu0 0
    %532 = vmatpush2.bf16.msra.mxu0 %v380
    %533 = vmatprep.subr.bf16.mxu0 0
    %534 = vmatpush2.bf16.msra.mxu0 %v379
    %535 = vmatprep.subr.bf16.mxu0 0
    %536 = vmatpush2.bf16.msra.mxu0 %v378
    %537 = vmatprep.subr.bf16.mxu0 0
    %538 = vmatpush2.bf16.msra.mxu0 %v377
    %539 = vmatprep.subr.bf16.mxu0 0
    %540 = vmatpush2.bf16.msra.mxu0 %v376
    %541 = vmatprep.subr.bf16.mxu0 0
    %542 = vmatpush2.bf16.msra.mxu0 %v375
    %543 = vmatprep.subr.bf16.mxu0 0
    %544 = vmatpush2.bf16.msra.mxu0 %v374
    %545 = vmatprep.subr.bf16.mxu0 0
    %546 = vmatpush2.bf16.msra.mxu0 %v373
    %547 = vmatprep.mubr.bf16.mxu0 %v33
    %548 = vmatmul.mubr.bf16.gmra.mxu0 %v32
    %v549 = vpop.f32.mrf.mxu0
    %v550 = vadd.f32 %v510, %v549
    %v551 = vpop.f32.mrf.mxu0
    %v552 = vpop.f32.mrf.mxu0
    %v553 = vpop.f32.mrf.mxu0
    %554 = vdwg.mxu0
    %555 = vmatprep.subr.bf16.mxu0 0
    %556 = vmatpush1.bf16.msra.mxu0 0
    %557 = vmatprep.subr.bf16.mxu0 0
    %558 = vmatpush1.bf16.msra.mxu0 0
    %559 = vmatprep.subr.bf16.mxu0 0
    %560 = vmatpush1.bf16.msra.mxu0 0
    %561 = vmatprep.subr.bf16.mxu0 0
    %562 = vmatpush1.bf16.msra.mxu0 0
    %563 = vmatprep.subr.bf16.mxu0 0
    %564 = vmatpush1.bf16.msra.mxu0 0
    %565 = vmatprep.subr.bf16.mxu0 0
    %566 = vmatpush1.bf16.msra.mxu0 0
    %567 = vmatprep.subr.bf16.mxu0 0
    %568 = vmatpush1.bf16.msra.mxu0 0
    %569 = vmatprep.subr.bf16.mxu0 0
    %570 = vmatpush1.bf16.msra.mxu0 %v381
    %571 = vmatprep.subr.bf16.mxu0 0
    %572 = vmatpush2.bf16.msra.mxu0 0
    %573 = vmatprep.subr.bf16.mxu0 0
    %574 = vmatpush2.bf16.msra.mxu0 0
    %575 = vmatprep.subr.bf16.mxu0 0
    %576 = vmatpush2.bf16.msra.mxu0 0
    %577 = vmatprep.subr.bf16.mxu0 0
    %578 = vmatpush2.bf16.msra.mxu0 0
    %579 = vmatprep.subr.bf16.mxu0 0
    %580 = vmatpush2.bf16.msra.mxu0 0
    %581 = vmatprep.subr.bf16.mxu0 0
    %582 = vmatpush2.bf16.msra.mxu0 0
    %583 = vmatprep.subr.bf16.mxu0 0
    %584 = vmatpush2.bf16.msra.mxu0 0
    %585 = vmatprep.subr.bf16.mxu0 0
    %586 = vmatpush2.bf16.msra.mxu0 0
    %587 = vmatprep.mubr.bf16.mxu0 0
    %588 = vmatmul.mubr.bf16.gmra.mxu0 %v433
    %v589 = vpop.f32.mrf.mxu0
    %v590 = vadd.f32 %v550, %v589
    %v591 = vpop.f32.mrf.mxu0
    %v592 = vpop.f32.mrf.mxu0
    %v593 = vpop.f32.mrf.mxu0
    %594 = vdwg.mxu0
    %595 = vadd.xlane.f32.xlu0 %v590
    %v596 = vpop.xlane.xlu0 %595
    %v597 = vmul.f32 %v590, %v590
    %598 = vadd.xlane.f32.xlu0 %v597
    %v599 = vpop.xlane.xlu0 %598
    %v600 = vmul.f32 %v596, 0.010526316
    %v601 = vmul.f32 %v599, 0.010526316
    %v602 = vmul.f32 %v600, %v600
    %v603 = vsub.f32 %v601, %v602
    %v604 = vmax.f32 %v603, 0.0
    %v605 = vsub.f32 %v590, %v600
    %v606 = vadd.f32 %v604, 1e-05
    %v607 = vrsqrt.pop %v606
    %v608 = vmul.f32 %v605, %v607
    %v609 = vlaneseq
    %v610 = vshrl.u32 %v609, 7
    %v611 = vsub.s32 1, %v610
    %v612 = vrot.slane %v19, %v611
    %v613 = vmul.f32 %v608, %v612
    %v614 = vlaneseq
    %v615 = vshrl.u32 %v614, 7
    %v616 = vsub.s32 2, %v615
    %v617 = vrot.slane %v19, %v616
    %v618 = vadd.f32 %v613, %v617
    %v619 = vmax.f32 %v618, 0.0
    %v620 = vpack.c.bf16 %v619, %v619
    %v621 = vld [vmem:[%s2] sm:$0xf]
    %v622 = vld [vmem:[%s2 + $0x4] sm:$0xf]
    %v623 = vld [vmem:[%s2 + $0x8] sm:$0xf]
    %v624 = vld [vmem:[%s2 + $0xc] sm:$0xf]
    %v625 = vld [vmem:[%s2 + $0x10] sm:$0xf]
    %v626 = vld [vmem:[%s2 + $0x14] sm:$0xf]
    %v627 = vld [vmem:[%s2 + $0x18] sm:$0xf]
    %v628 = vld [vmem:[%s2 + $0x1c] sm:$0xf]
    %v629 = vld [vmem:[%s2 + $0x20] sm:$0xf]
    %v630 = vld [vmem:[%s2 + $0x24] sm:$0xf]
    %v631 = vld [vmem:[%s2 + $0x28] sm:$0xf]
    %v632 = vld [vmem:[%s2 + $0x2c] sm:$0xf]
    %v633 = vld [vmem:[%s2 + $0x30] sm:$0xf]
    %v634 = vld [vmem:[%s2 + $0x34] sm:$0xf]
    %v635 = vld [vmem:[%s2 + $0x38] sm:$0xf]
    %v636 = vld [vmem:[%s2 + $0x3c] sm:$0xf]
    %v637 = vlaneseq
    %v638 = vshrl.u32 %v637, 7
    %v639 = vsub.s32 3, %v638
    %v640 = vrot.slane %v19, %v639
    %v657 = vunpack.c.l.b16 %v621
    %v658 = vunpack.c.l.b16 %v622
    %v659 = vunpack.c.l.b16 %v623
    %v660 = vunpack.c.l.b16 %v624
    %v661 = vunpack.c.l.b16 %v625
    %v662 = vunpack.c.l.b16 %v626
    %v663 = vunpack.c.l.b16 %v627
    %v664 = vunpack.c.l.b16 %v628
    %v665 = vunpack.c.l.b16 %v629
    %v666 = vunpack.c.l.b16 %v630
    %v667 = vunpack.c.l.b16 %v631
    %v668 = vunpack.c.l.b16 %v632
    %v669 = vunpack.c.l.b16 %v633
    %v670 = vunpack.c.l.b16 %v634
    %v671 = vunpack.c.l.b16 %v635
    %v672 = vunpack.c.l.b16 %v636
    %v673 = vpack.c.b16 %v658, %v657
    %v674 = vpack.c.b16 %v660, %v659
    %v675 = vpack.c.b16 %v662, %v661
    %v676 = vpack.c.b16 %v664, %v663
    %v677 = vpack.c.b16 %v666, %v665
    %v678 = vpack.c.b16 %v668, %v667
    %v679 = vpack.c.b16 %v670, %v669
    %v680 = vpack.c.b16 %v672, %v671
    %689 = vmatprep.subr.bf16.mxu0 0
    %690 = vmatpush1.bf16.msra.mxu0 %v680
    %691 = vmatprep.subr.bf16.mxu0 0
    %692 = vmatpush1.bf16.msra.mxu0 %v679
    %693 = vmatprep.subr.bf16.mxu0 0
    %694 = vmatpush1.bf16.msra.mxu0 %v678
    %695 = vmatprep.subr.bf16.mxu0 0
    %696 = vmatpush1.bf16.msra.mxu0 %v677
    %697 = vmatprep.subr.bf16.mxu0 0
    %698 = vmatpush1.bf16.msra.mxu0 %v676
    %699 = vmatprep.subr.bf16.mxu0 0
    %700 = vmatpush1.bf16.msra.mxu0 %v675
    %701 = vmatprep.subr.bf16.mxu0 0
    %702 = vmatpush1.bf16.msra.mxu0 %v674
    %703 = vmatprep.subr.bf16.mxu0 0
    %704 = vmatpush1.bf16.msra.mxu0 %v673
    %705 = vmatprep.subr.bf16.mxu0 0
    %706 = vmatpush2.bf16.msra.mxu0 0
    %707 = vmatprep.subr.bf16.mxu0 0
    %708 = vmatpush2.bf16.msra.mxu0 0
    %709 = vmatprep.subr.bf16.mxu0 0
    %710 = vmatpush2.bf16.msra.mxu0 0
    %711 = vmatprep.subr.bf16.mxu0 0
    %712 = vmatpush2.bf16.msra.mxu0 0
    %713 = vmatprep.subr.bf16.mxu0 0
    %714 = vmatpush2.bf16.msra.mxu0 0
    %715 = vmatprep.subr.bf16.mxu0 0
    %716 = vmatpush2.bf16.msra.mxu0 0
    %717 = vmatprep.subr.bf16.mxu0 0
    %718 = vmatpush2.bf16.msra.mxu0 0
    %719 = vmatprep.subr.bf16.mxu0 0
    %720 = vmatpush2.bf16.msra.mxu0 0
    %721 = vmatprep.mubr.bf16.mxu0 0
    %722 = vmatmul.mubr.bf16.gmra.mxu0 %v620
    %v723 = vpop.f32.mrf.mxu0
    %v724 = vadd.f32 %v640, %v723
    %v725 = vpop.f32.mrf.mxu0
    %v726 = vpop.f32.mrf.mxu0
    %v727 = vpop.f32.mrf.mxu0
    %728 = vdwg.mxu0
    %729 = vadd.xlane.f32.xlu0 %v724
    %v730 = vpop.xlane.xlu0 %729
    %v731 = vmul.f32 %v724, %v724
    %732 = vadd.xlane.f32.xlu0 %v731
    %v733 = vpop.xlane.xlu0 %732
    %v734 = vmul.f32 %v730, 0.011111111
    %v735 = vmul.f32 %v733, 0.011111111
    %v736 = vmul.f32 %v734, %v734
    %v737 = vsub.f32 %v735, %v736
    %v738 = vmax.f32 %v737, 0.0
    %v739 = vsub.f32 %v724, %v734
    %v740 = vadd.f32 %v738, 1e-05
    %v741 = vrsqrt.pop %v740
    %v742 = vmul.f32 %v739, %v741
    %v743 = vlaneseq
    %v744 = vshrl.u32 %v743, 7
    %v745 = vsub.s32 4, %v744
    %v746 = vrot.slane %v19, %v745
    %v747 = vmul.f32 %v742, %v746
    %v748 = vlaneseq
    %v749 = vshrl.u32 %v748, 7
    %v750 = vsub.s32 5, %v749
    %v751 = vrot.slane %v19, %v750
    %v752 = vadd.f32 %v747, %v751
    %v753 = vmax.f32 %v752, 0.0
    %v754 = vpack.c.bf16 %v753, %v753
    %s755 = scalar_lea.vmem %s2, 64
    %v756 = vld [vmem:[%s755] sm:$0xf]
    %v757 = vld [vmem:[%s755 + $0x4] sm:$0xf]
    %v758 = vld [vmem:[%s755 + $0x8] sm:$0xf]
    %v759 = vld [vmem:[%s755 + $0xc] sm:$0xf]
    %v760 = vld [vmem:[%s755 + $0x10] sm:$0xf]
    %v761 = vld [vmem:[%s755 + $0x14] sm:$0xf]
    %v762 = vld [vmem:[%s755 + $0x18] sm:$0xf]
    %v763 = vld [vmem:[%s755 + $0x1c] sm:$0xf]
    %v764 = vld [vmem:[%s755 + $0x20] sm:$0xf]
    %v765 = vld [vmem:[%s755 + $0x24] sm:$0xf]
    %v766 = vld [vmem:[%s755 + $0x28] sm:$0xf]
    %v767 = vld [vmem:[%s755 + $0x2c] sm:$0xf]
    %v768 = vld [vmem:[%s755 + $0x30] sm:$0xf]
    %v769 = vld [vmem:[%s755 + $0x34] sm:$0xf]
    %v770 = vld [vmem:[%s755 + $0x38] sm:$0xf]
    %v771 = vld [vmem:[%s755 + $0x3c] sm:$0xf]
    %v772 = vlaneseq
    %v773 = vshrl.u32 %v772, 7
    %v774 = vsub.s32 6, %v773
    %v775 = vrot.slane %v19, %v774
    %v792 = vunpack.c.l.b16 %v756
    %v793 = vunpack.c.l.b16 %v757
    %v794 = vunpack.c.l.b16 %v758
    %v795 = vunpack.c.l.b16 %v759
    %v796 = vunpack.c.l.b16 %v760
    %v797 = vunpack.c.l.b16 %v761
    %v798 = vunpack.c.l.b16 %v762
    %v799 = vunpack.c.l.b16 %v763
    %v800 = vunpack.c.l.b16 %v764
    %v801 = vunpack.c.l.b16 %v765
    %v802 = vunpack.c.l.b16 %v766
    %v803 = vunpack.c.l.b16 %v767
    %v804 = vunpack.c.l.b16 %v768
    %v805 = vunpack.c.l.b16 %v769
    %v806 = vunpack.c.l.b16 %v770
    %v807 = vunpack.c.l.b16 %v771
    %v808 = vpack.c.b16 %v793, %v792
    %v809 = vpack.c.b16 %v795, %v794
    %v810 = vpack.c.b16 %v797, %v796
    %v811 = vpack.c.b16 %v799, %v798
    %v812 = vpack.c.b16 %v801, %v800
    %v813 = vpack.c.b16 %v803, %v802
    %v814 = vpack.c.b16 %v805, %v804
    %v815 = vpack.c.b16 %v807, %v806
    %824 = vmatprep.subr.bf16.mxu0 0
    %825 = vmatpush1.bf16.msra.mxu0 %v815
    %826 = vmatprep.subr.bf16.mxu0 0
    %827 = vmatpush1.bf16.msra.mxu0 %v814
    %828 = vmatprep.subr.bf16.mxu0 0
    %829 = vmatpush1.bf16.msra.mxu0 %v813
    %830 = vmatprep.subr.bf16.mxu0 0
    %831 = vmatpush1.bf16.msra.mxu0 %v812
    %832 = vmatprep.subr.bf16.mxu0 0
    %833 = vmatpush1.bf16.msra.mxu0 %v811
    %834 = vmatprep.subr.bf16.mxu0 0
    %835 = vmatpush1.bf16.msra.mxu0 %v810
    %836 = vmatprep.subr.bf16.mxu0 0
    %837 = vmatpush1.bf16.msra.mxu0 %v809
    %838 = vmatprep.subr.bf16.mxu0 0
    %839 = vmatpush1.bf16.msra.mxu0 %v808
    %840 = vmatprep.subr.bf16.mxu0 0
    %841 = vmatpush2.bf16.msra.mxu0 0
    %842 = vmatprep.subr.bf16.mxu0 0
    %843 = vmatpush2.bf16.msra.mxu0 0
    %844 = vmatprep.subr.bf16.mxu0 0
    %845 = vmatpush2.bf16.msra.mxu0 0
    %846 = vmatprep.subr.bf16.mxu0 0
    %847 = vmatpush2.bf16.msra.mxu0 0
    %848 = vmatprep.subr.bf16.mxu0 0
    %849 = vmatpush2.bf16.msra.mxu0 0
    %850 = vmatprep.subr.bf16.mxu0 0
    %851 = vmatpush2.bf16.msra.mxu0 0
    %852 = vmatprep.subr.bf16.mxu0 0
    %853 = vmatpush2.bf16.msra.mxu0 0
    %854 = vmatprep.subr.bf16.mxu0 0
    %855 = vmatpush2.bf16.msra.mxu0 0
    %856 = vmatprep.mubr.bf16.mxu0 0
    %857 = vmatmul.mubr.bf16.gmra.mxu0 %v754
    %v858 = vpop.f32.mrf.mxu0
    %v859 = vadd.f32 %v775, %v858
    %v860 = vpop.f32.mrf.mxu0
    %v861 = vpop.f32.mrf.mxu0
    %v862 = vpop.f32.mrf.mxu0
    %863 = vdwg.mxu0
    %864 = vadd.xlane.f32.xlu0 %v859
    %v865 = vpop.xlane.xlu0 %864
    %v866 = vmul.f32 %v859, %v859
    %867 = vadd.xlane.f32.xlu0 %v866
    %v868 = vpop.xlane.xlu0 %867
    %v869 = vmul.f32 %v865, 0.011494253
    %v870 = vmul.f32 %v868, 0.011494253
    %v871 = vmul.f32 %v869, %v869
    %v872 = vsub.f32 %v870, %v871
    %v873 = vmax.f32 %v872, 0.0
    %v874 = vsub.f32 %v859, %v869
    %v875 = vadd.f32 %v873, 1e-05
    %v876 = vrsqrt.pop %v875
    %v877 = vmul.f32 %v874, %v876
    %v878 = vlaneseq
    %v879 = vshrl.u32 %v878, 7
    %v880 = vsub.s32 7, %v879
    %v881 = vrot.slane %v19, %v880
    %v882 = vmul.f32 %v877, %v881
    %v883 = vlaneseq
    %v884 = vshrl.u32 %v883, 7
    %v885 = vsub.s32 0, %v884
    %v886 = vrot.slane %v20, %v885
    %v887 = vadd.f32 %v882, %v886
    %v888 = vmax.f32 %v887, 0.0
    %v889 = vpack.c.bf16 %v888, %v888
    %s890 = scalar_lea.vmem %s2, 128
    %v891 = vld [vmem:[%s890] sm:$0xf]
    %v892 = vld [vmem:[%s890 + $0x4] sm:$0xf]
    %v893 = vld [vmem:[%s890 + $0x8] sm:$0xf]
    %v894 = vld [vmem:[%s890 + $0xc] sm:$0xf]
    %v895 = vld [vmem:[%s890 + $0x10] sm:$0xf]
    %v896 = vld [vmem:[%s890 + $0x14] sm:$0xf]
    %v897 = vld [vmem:[%s890 + $0x18] sm:$0xf]
    %v898 = vld [vmem:[%s890 + $0x1c] sm:$0xf]
    %v899 = vld [vmem:[%s890 + $0x20] sm:$0xf]
    %v900 = vld [vmem:[%s890 + $0x24] sm:$0xf]
    %v901 = vld [vmem:[%s890 + $0x28] sm:$0xf]
    %v902 = vld [vmem:[%s890 + $0x2c] sm:$0xf]
    %v903 = vld [vmem:[%s890 + $0x30] sm:$0xf]
    %v904 = vld [vmem:[%s890 + $0x34] sm:$0xf]
    %v905 = vld [vmem:[%s890 + $0x38] sm:$0xf]
    %v906 = vld [vmem:[%s890 + $0x3c] sm:$0xf]
    %v907 = vlaneseq
    %v908 = vshrl.u32 %v907, 7
    %v909 = vsub.s32 1, %v908
    %v910 = vrot.slane %v20, %v909
    %v927 = vunpack.c.l.b16 %v891
    %v928 = vunpack.c.l.b16 %v892
    %v929 = vunpack.c.l.b16 %v893
    %v930 = vunpack.c.l.b16 %v894
    %v931 = vunpack.c.l.b16 %v895
    %v932 = vunpack.c.l.b16 %v896
    %v933 = vunpack.c.l.b16 %v897
    %v934 = vunpack.c.l.b16 %v898
    %v935 = vunpack.c.l.b16 %v899
    %v936 = vunpack.c.l.b16 %v900
    %v937 = vunpack.c.l.b16 %v901
    %v938 = vunpack.c.l.b16 %v902
    %v939 = vunpack.c.l.b16 %v903
    %v940 = vunpack.c.l.b16 %v904
    %v941 = vunpack.c.l.b16 %v905
    %v942 = vunpack.c.l.b16 %v906
    %v943 = vpack.c.b16 %v928, %v927
    %v944 = vpack.c.b16 %v930, %v929
    %v945 = vpack.c.b16 %v932, %v931
    %v946 = vpack.c.b16 %v934, %v933
    %v947 = vpack.c.b16 %v936, %v935
    %v948 = vpack.c.b16 %v938, %v937
    %v949 = vpack.c.b16 %v940, %v939
    %v950 = vpack.c.b16 %v942, %v941
    %959 = vmatprep.subr.bf16.mxu0 0
    %960 = vmatpush1.bf16.msra.mxu0 %v950
    %961 = vmatprep.subr.bf16.mxu0 0
    %962 = vmatpush1.bf16.msra.mxu0 %v949
    %963 = vmatprep.subr.bf16.mxu0 0
    %964 = vmatpush1.bf16.msra.mxu0 %v948
    %965 = vmatprep.subr.bf16.mxu0 0
    %966 = vmatpush1.bf16.msra.mxu0 %v947
    %967 = vmatprep.subr.bf16.mxu0 0
    %968 = vmatpush1.bf16.msra.mxu0 %v946
    %969 = vmatprep.subr.bf16.mxu0 0
    %970 = vmatpush1.bf16.msra.mxu0 %v945
    %971 = vmatprep.subr.bf16.mxu0 0
    %972 = vmatpush1.bf16.msra.mxu0 %v944
    %973 = vmatprep.subr.bf16.mxu0 0
    %974 = vmatpush1.bf16.msra.mxu0 %v943
    %975 = vmatprep.subr.bf16.mxu0 0
    %976 = vmatpush2.bf16.msra.mxu0 0
    %977 = vmatprep.subr.bf16.mxu0 0
    %978 = vmatpush2.bf16.msra.mxu0 0
    %979 = vmatprep.subr.bf16.mxu0 0
    %980 = vmatpush2.bf16.msra.mxu0 0
    %981 = vmatprep.subr.bf16.mxu0 0
    %982 = vmatpush2.bf16.msra.mxu0 0
    %983 = vmatprep.subr.bf16.mxu0 0
    %984 = vmatpush2.bf16.msra.mxu0 0
    %985 = vmatprep.subr.bf16.mxu0 0
    %986 = vmatpush2.bf16.msra.mxu0 0
    %987 = vmatprep.subr.bf16.mxu0 0
    %988 = vmatpush2.bf16.msra.mxu0 0
    %989 = vmatprep.subr.bf16.mxu0 0
    %990 = vmatpush2.bf16.msra.mxu0 0
    %991 = vmatprep.mubr.bf16.mxu0 0
    %992 = vmatmul.mubr.bf16.gmra.mxu0 %v889
    %v993 = vpop.f32.mrf.mxu0
    %v994 = vadd.f32 %v910, %v993
    %v995 = vpop.f32.mrf.mxu0
    %v996 = vpop.f32.mrf.mxu0
    %v997 = vpop.f32.mrf.mxu0
    %998 = vdwg.mxu0
    %999 = vadd.xlane.f32.xlu0 %v994
    %v1000 = vpop.xlane.xlu0 %999
    %v1001 = vmul.f32 %v994, %v994
    %1002 = vadd.xlane.f32.xlu0 %v1001
    %v1003 = vpop.xlane.xlu0 %1002
    %v1004 = vmul.f32 %v1000, 0.0121951215
    %v1005 = vmul.f32 %v1003, 0.0121951215
    %v1006 = vmul.f32 %v1004, %v1004
    %v1007 = vsub.f32 %v1005, %v1006
    %v1008 = vmax.f32 %v1007, 0.0
    %v1009 = vsub.f32 %v994, %v1004
    %v1010 = vadd.f32 %v1008, 1e-05
    %v1011 = vrsqrt.pop %v1010
    %v1012 = vmul.f32 %v1009, %v1011
    %v1013 = vlaneseq
    %v1014 = vshrl.u32 %v1013, 7
    %v1015 = vsub.s32 2, %v1014
    %v1016 = vrot.slane %v20, %v1015
    %v1017 = vmul.f32 %v1012, %v1016
    %v1018 = vlaneseq
    %v1019 = vshrl.u32 %v1018, 7
    %v1020 = vsub.s32 3, %v1019
    %v1021 = vrot.slane %v20, %v1020
    %v1022 = vadd.f32 %v1017, %v1021
    %v1023 = vmax.f32 %v1022, 0.0
    %v1024 = vpack.c.bf16 %v1023, %v1023
    %s1025 = scalar_lea.vmem %s2, 192
    %v1026 = vld [vmem:[%s1025] sm:$0xf]
    %v1027 = vld [vmem:[%s1025 + $0x4] sm:$0xf]
    %v1028 = vld [vmem:[%s1025 + $0x8] sm:$0xf]
    %v1029 = vld [vmem:[%s1025 + $0xc] sm:$0xf]
    %v1030 = vld [vmem:[%s1025 + $0x10] sm:$0xf]
    %v1031 = vld [vmem:[%s1025 + $0x14] sm:$0xf]
    %v1032 = vld [vmem:[%s1025 + $0x18] sm:$0xf]
    %v1033 = vld [vmem:[%s1025 + $0x1c] sm:$0xf]
    %v1034 = vld [vmem:[%s1025 + $0x20] sm:$0xf]
    %v1035 = vld [vmem:[%s1025 + $0x24] sm:$0xf]
    %v1036 = vld [vmem:[%s1025 + $0x28] sm:$0xf]
    %v1037 = vld [vmem:[%s1025 + $0x2c] sm:$0xf]
    %v1038 = vld [vmem:[%s1025 + $0x30] sm:$0xf]
    %v1039 = vld [vmem:[%s1025 + $0x34] sm:$0xf]
    %v1040 = vld [vmem:[%s1025 + $0x38] sm:$0xf]
    %v1041 = vld [vmem:[%s1025 + $0x3c] sm:$0xf]
    %v1042 = vlaneseq
    %v1043 = vshrl.u32 %v1042, 7
    %v1044 = vsub.s32 4, %v1043
    %v1045 = vrot.slane %v20, %v1044
    %v1062 = vunpack.c.l.b16 %v1026
    %v1063 = vunpack.c.l.b16 %v1027
    %v1064 = vunpack.c.l.b16 %v1028
    %v1065 = vunpack.c.l.b16 %v1029
    %v1066 = vunpack.c.l.b16 %v1030
    %v1067 = vunpack.c.l.b16 %v1031
    %v1068 = vunpack.c.l.b16 %v1032
    %v1069 = vunpack.c.l.b16 %v1033
    %v1070 = vunpack.c.l.b16 %v1034
    %v1071 = vunpack.c.l.b16 %v1035
    %v1072 = vunpack.c.l.b16 %v1036
    %v1073 = vunpack.c.l.b16 %v1037
    %v1074 = vunpack.c.l.b16 %v1038
    %v1075 = vunpack.c.l.b16 %v1039
    %v1076 = vunpack.c.l.b16 %v1040
    %v1077 = vunpack.c.l.b16 %v1041
    %v1078 = vpack.c.b16 %v1063, %v1062
    %v1079 = vpack.c.b16 %v1065, %v1064
    %v1080 = vpack.c.b16 %v1067, %v1066
    %v1081 = vpack.c.b16 %v1069, %v1068
    %v1082 = vpack.c.b16 %v1071, %v1070
    %v1083 = vpack.c.b16 %v1073, %v1072
    %v1084 = vpack.c.b16 %v1075, %v1074
    %v1085 = vpack.c.b16 %v1077, %v1076
    %1094 = vmatprep.subr.bf16.mxu0 0
    %1095 = vmatpush1.bf16.msra.mxu0 %v1085
    %1096 = vmatprep.subr.bf16.mxu0 0
    %1097 = vmatpush1.bf16.msra.mxu0 %v1084
    %1098 = vmatprep.subr.bf16.mxu0 0
    %1099 = vmatpush1.bf16.msra.mxu0 %v1083
    %1100 = vmatprep.subr.bf16.mxu0 0
    %1101 = vmatpush1.bf16.msra.mxu0 %v1082
    %1102 = vmatprep.subr.bf16.mxu0 0
    %1103 = vmatpush1.bf16.msra.mxu0 %v1081
    %1104 = vmatprep.subr.bf16.mxu0 0
    %1105 = vmatpush1.bf16.msra.mxu0 %v1080
    %1106 = vmatprep.subr.bf16.mxu0 0
    %1107 = vmatpush1.bf16.msra.mxu0 %v1079
    %1108 = vmatprep.subr.bf16.mxu0 0
    %1109 = vmatpush1.bf16.msra.mxu0 %v1078
    %1110 = vmatprep.subr.bf16.mxu0 0
    %1111 = vmatpush2.bf16.msra.mxu0 0
    %1112 = vmatprep.subr.bf16.mxu0 0
    %1113 = vmatpush2.bf16.msra.mxu0 0
    %1114 = vmatprep.subr.bf16.mxu0 0
    %1115 = vmatpush2.bf16.msra.mxu0 0
    %1116 = vmatprep.subr.bf16.mxu0 0
    %1117 = vmatpush2.bf16.msra.mxu0 0
    %1118 = vmatprep.subr.bf16.mxu0 0
    %1119 = vmatpush2.bf16.msra.mxu0 0
    %1120 = vmatprep.subr.bf16.mxu0 0
    %1121 = vmatpush2.bf16.msra.mxu0 0
    %1122 = vmatprep.subr.bf16.mxu0 0
    %1123 = vmatpush2.bf16.msra.mxu0 0
    %1124 = vmatprep.subr.bf16.mxu0 0
    %1125 = vmatpush2.bf16.msra.mxu0 0
    %1126 = vmatprep.mubr.bf16.mxu0 0
    %1127 = vmatmul.mubr.bf16.gmra.mxu0 %v1024
    %v1128 = vpop.f32.mrf.mxu0
    %v1129 = vadd.f32 %v1045, %v1128
    %v1130 = vpop.f32.mrf.mxu0
    %v1131 = vpop.f32.mrf.mxu0
    %v1132 = vpop.f32.mrf.mxu0
    %1133 = vdwg.mxu0
    %vm1134 = vcmask 80896
    %1135 = vst.msk [vmem:[#allocation2] sm:$0xff] %vm1134, %v1129
    // Predicated region
    $region18: #{bad_vgg_dec_active_forward.1} parent=1 // pred_check
      _
    $region19: #{bad_vgg_dec_active_forward.1} parent=1 // pred_check_branch
      %1137 = sbr.rel (0) target = $region21
    $region20: #{bad_vgg_dec_active_forward.1} parent=1 // pred_region
      %s1139 = ssub.s32 128, 128
      %1140 = vsyncadd [#allocation3], %s1139
      %s1142 = sshll.u32 [#allocation2], 4
      %s1143 = int_to_ptr.vmem [resolvable:$true] %s1142
      %1145 = dma.vmem_to_hbm [thread:$0]  %s1143, 128, %s4, [#allocation3]
    $region21: #{bad_vgg_dec_active_forward.1} parent=1 // pred_fallthru
      _
    // Predicated region
    $region22: #{bad_vgg_dec_active_forward.1} parent=1 // pred_check
      _
    $region23: #{bad_vgg_dec_active_forward.1} parent=1 // pred_check_branch
      %1147 = sbr.rel (0) target = $region25
    $region24: #{bad_vgg_dec_active_forward.1} parent=1 // pred_region
      %1148 = dma.done [#allocation3], 128
    $region25: #{bad_vgg_dec_active_forward.1} parent=1 // pred_fallthru
      _
    %1149 = vsyncpa [#allocation3], 1

</llo_original>
